<compile_context>
chip_gen: v7x
topology: tpu7x:2x2x1
jax: 0.10.0
libtpu: 0.0.40
codegen_flags: <defaults>
</compile_context>

<pallas_src>
import jax
import jax.numpy as jnp
from jax.experimental import pallas as pl
from jax.experimental.pallas import tpu as pltpu


def _round_up(x, m):
    return (x + m - 1) // m * m


def _cdiv(a, b):
    return -(-a // b)


def _pos_enc_kernel(d_ref, spread_ref, whi_ref, wlo_ref, bias_ref, out_ref):
    # d_ref     : (R, kdim)  int32   -- d values (<= 66), a ones column, zero pad
    # spread_ref: (kdim, wide) bf16  -- spread matrix; last live row = -(lane % C)
    # whi_ref   : (wide, 128) bf16   -- block-diagonal bf16(W^T)
    # wlo_ref   : (wide, 128) bf16   -- block-diagonal bf16(W^T - bf16(W^T))
    # bias_ref  : (1, 128)    f32    -- tiled bias row
    # out_ref   : (R, 128)    f32    -- lane-dense output slab
    d_bf = d_ref[...].astype(jnp.float32).astype(jnp.bfloat16)   # exact: values <= 66
    # diff[r, l] = d[r, l // C] - (l % C)   (exact in f32 accumulation)
    diff = jnp.dot(d_bf, spread_ref[...], preferred_element_type=jnp.float32)
    onehot = (diff == 0.0).astype(jnp.bfloat16)                  # 1 compare + 1 convert / elem
    acc = jnp.dot(onehot, whi_ref[...], preferred_element_type=jnp.float32)
    acc = acc + jnp.dot(onehot, wlo_ref[...], preferred_element_type=jnp.float32)
    out_ref[...] = acc + bias_ref[...]


def positional_encodings(offset, mask, w_t, bias, *, max_relative_feature=32,
                         block_rows=1024):
    """offset, mask: int [B, L, K]; w_t: [C, E] (W^T); bias: [E]. Returns [B, L, K, E] f32."""
    num_classes = 2 * max_relative_feature + 2
    assert w_t.shape[0] == num_classes
    num_emb = w_t.shape[1]

    # Pack `pack` consecutive elements per output row so the output last dim is
    # lane-dense (pack*E == 128 for E=16).  pack=1 fallback keeps correctness but
    # produces masked (<128 lane) stores -- known perf cliff.
    if num_emb <= 128 and 128 % num_emb == 0:
        pack = 128 // num_emb
    else:
        pack = 1
    wide = pack * num_classes                       # no bias column anymore
    kdim = _round_up(pack + 1, 16)                  # d columns + ones column, bf16-friendly pad

    orig_shape = offset.shape
    offset = offset.astype(jnp.int32)
    mask = mask.astype(jnp.int32)

    # Precompute d on the host graph (fused into the padding copy by XLA).
    d = (jnp.clip(offset + max_relative_feature, 0, 2 * max_relative_feature) * mask
         + (1 - mask) * (2 * max_relative_feature + 1))
    d = d.reshape(-1)
    n = d.shape[0]

    rows = _cdiv(n, pack)
    # Row tile: as large as possible, but guarantee >= 2 grid steps when the input
    # allows it so ("parallel",) can use both TensorCores on v7x.
    max_block = _round_up(rows, 8)
    if max_block > 8:
        max_block = min(max_block, max(_round_up(_cdiv(rows, 2), 8), 8))
    block_rows = max(8, min(_round_up(block_rows, 8), max_block))
    rows_pad = _round_up(rows, block_rows)

    d = jnp.pad(d, (0, rows_pad * pack - n)).reshape(rows_pad, pack)
    d_ext = jnp.concatenate([d, jnp.ones((rows_pad, 1), jnp.int32)], axis=1)
    d_ext = jnp.pad(d_ext, ((0, 0), (0, kdim - pack - 1)))          # (rows_pad, kdim)

    # Spread matrix: row g broadcasts d[:, g] over lanes [g*C, (g+1)*C); the ones
    # column hits a row holding -(lane % C); zero-padded rows contribute nothing.
    lane = jnp.arange(wide, dtype=jnp.int32)
    spread = (lane[None, :] // num_classes
              == jnp.arange(pack, dtype=jnp.int32)[:, None]).astype(jnp.float32)
    spread_ext = jnp.concatenate(
        [spread, -(lane % num_classes).astype(jnp.float32)[None, :]], axis=0)
    spread_ext = jnp.pad(spread_ext,
                         ((0, kdim - pack - 1), (0, 0))).astype(jnp.bfloat16)

    # Block-diagonal weight (pack copies of W^T), split into bf16 hi/lo halves so
    # the main contraction runs as two bf16 MXU passes with f32 accumulation.
    w_blk = jnp.kron(jnp.eye(pack, dtype=jnp.float32), w_t.astype(jnp.float32))
    w_hi = w_blk.astype(jnp.bfloat16)
    w_lo = (w_blk - w_hi.astype(jnp.float32)).astype(jnp.bfloat16)
    bias_row = jnp.tile(bias.astype(jnp.float32), pack)[None, :]     # (1, pack*E)

    out = pl.pallas_call(
        _pos_enc_kernel,
        out_shape=jax.ShapeDtypeStruct((rows_pad, pack * num_emb), jnp.float32),
        grid_spec=pl.GridSpec(
            grid=(rows_pad // block_rows,),
            in_specs=[
                pl.BlockSpec((block_rows, kdim), lambda i: (i, 0)),
                pl.BlockSpec((kdim, wide), lambda i: (0, 0)),
                pl.BlockSpec((wide, pack * num_emb), lambda i: (0, 0)),
                pl.BlockSpec((wide, pack * num_emb), lambda i: (0, 0)),
                pl.BlockSpec((1, pack * num_emb), lambda i: (0, 0)),
            ],
            out_specs=pl.BlockSpec((block_rows, pack * num_emb), lambda i: (i, 0)),
        ),
        compiler_params=pltpu.CompilerParams(dimension_semantics=("parallel",)),
    )(d_ext, spread_ext, w_hi, w_lo, bias_row)

    return out.reshape(rows_pad * pack, num_emb)[:n].reshape(*orig_shape, num_emb)


def _reference(offset, mask, w_t, bias, max_rel=32):
    d = jnp.clip(offset + max_rel, 0, 2 * max_rel) * mask + (1 - mask) * (2 * max_rel + 1)
    oh = jax.nn.one_hot(d, 2 * max_rel + 2, dtype=jnp.float32)
    return jnp.einsum("...c,ce->...e", oh, w_t,
                      precision=jax.lax.Precision.HIGHEST) + bias


if __name__ == "__main__":
    key = jax.random.PRNGKey(0)
    k_off, k_mask, k_w, k_b = jax.random.split(key, 4)

    # Module config (synthetic, deterministic init).
    max_relative_feature = 32
    num_embeddings = 16
    num_classes = 2 * max_relative_feature + 2  # 66

    # Small shapes: batch=2, seq=8, neighbors=8 -> offset/mask [2, 8, 8] int32
    B, L, K = 2, 8, 8
    offset = jax.random.randint(k_off, (B, L, K), -64, 64, dtype=jnp.int32)
    mask = jax.random.randint(k_mask, (B, L, K), 0, 2, dtype=jnp.int32)

    # nn.Linear default-style init: U(-1/sqrt(in), 1/sqrt(in)); stored as W^T [C, E].
    bound = 1.0 / (num_classes ** 0.5)
    w_t = jax.random.uniform(k_w, (num_classes, num_embeddings), jnp.float32, -bound, bound)
    bias = jax.random.uniform(k_b, (num_embeddings,), jnp.float32, -bound, bound)

    out = positional_encodings(
        offset, mask, w_t, bias, max_relative_feature=max_relative_feature
    )
    out = jax.block_until_ready(out)

    ref = _reference(offset, mask, w_t, bias, max_relative_feature)
    assert out.shape == (B, L, K, num_embeddings)
    err = float(jnp.abs(out - ref).max())
    assert jnp.allclose(out, ref, atol=1e-5, rtol=1e-5), err

    print("KERNEL_OK")
</pallas_src>

<mosaic_0001>
module attributes {stable_mosaic.version = 11 : i64} {
  func.func @_pos_enc_kernel(%arg0: i32, %arg1: memref<8x16xi32, #tpu.memory_space<vmem>>, %arg2: memref<16x528xbf16, #tpu.memory_space<vmem>>, %arg3: memref<528x128xbf16, #tpu.memory_space<vmem>>, %arg4: memref<528x128xbf16, #tpu.memory_space<vmem>>, %arg5: memref<1x128xf32, #tpu.memory_space<vmem>>, %arg6: memref<8x128xf32, #tpu.memory_space<vmem>>) attributes {dimension_semantics = [#tpu.dimension_semantics<parallel>], iteration_bounds = array<i64: 2>, scalar_prefetch = 0 : i64, scratch_operands = 0 : i64, tpu.core_type = #tpu.core_type<tc>, window_params = [{transform_indices = @transform_0, window_bounds = array<i64: 8, 16>}, {pipeline_mode = #tpu.pipeline_mode<synchronous>, transform_indices = @transform_1, window_bounds = array<i64: 16, 528>}, {pipeline_mode = #tpu.pipeline_mode<synchronous>, transform_indices = @transform_2, window_bounds = array<i64: 528, 128>}, {pipeline_mode = #tpu.pipeline_mode<synchronous>, transform_indices = @transform_3, window_bounds = array<i64: 528, 128>}, {pipeline_mode = #tpu.pipeline_mode<synchronous>, transform_indices = @transform_4, window_bounds = array<i64: 1, 128>}, {transform_indices = @transform_5, window_bounds = array<i64: 8, 128>}]} {
    %c0 = arith.constant 0 : index
    %c0_0 = arith.constant 0 : index
    %0 = vector.load %arg1[%c0, %c0_0] : memref<8x16xi32, #tpu.memory_space<vmem>>, vector<8x16xi32>
    %1 = arith.sitofp %0 : vector<8x16xi32> to vector<8x16xf32>
    %2 = arith.truncf %1 : vector<8x16xf32> to vector<8x16xbf16>
    %c0_1 = arith.constant 0 : index
    %c0_2 = arith.constant 0 : index
    %3 = vector.load %arg2[%c0_1, %c0_2] : memref<16x528xbf16, #tpu.memory_space<vmem>>, vector<16x528xbf16>
    %cst = arith.constant dense<0.000000e+00> : vector<8x528xf32>
    %4 = tpu.matmul %2, %3, %cst {dimension_numbers = #tpu.dot_dimension_numbers<[1], [0], [0], [1], [0, 0, 1, 1], [], []>} : vector<8x16xbf16>, vector<16x528xbf16>, vector<8x528xf32> -> vector<8x528xf32>
    %cst_3 = arith.constant 0.000000e+00 : f32
    %5 = vector.broadcast %cst_3 : f32 to vector<8x528xf32>
    %6 = arith.cmpf oeq, %4, %5 : vector<8x528xf32>
    %7 = arith.extui %6 : vector<8x528xi1> to vector<8x528xi32>
    %8 = arith.sitofp %7 : vector<8x528xi32> to vector<8x528xf32>
    %9 = arith.truncf %8 : vector<8x528xf32> to vector<8x528xbf16>
    %c0_4 = arith.constant 0 : index
    %c0_5 = arith.constant 0 : index
    %10 = vector.load %arg3[%c0_4, %c0_5] : memref<528x128xbf16, #tpu.memory_space<vmem>>, vector<528x128xbf16>
    %cst_6 = arith.constant dense<0.000000e+00> : vector<8x128xf32>
    %11 = tpu.matmul %9, %10, %cst_6 {dimension_numbers = #tpu.dot_dimension_numbers<[1], [0], [0], [1], [0, 0, 1, 1], [], []>} : vector<8x528xbf16>, vector<528x128xbf16>, vector<8x128xf32> -> vector<8x128xf32>
    %c0_7 = arith.constant 0 : index
    %c0_8 = arith.constant 0 : index
    %12 = vector.load %arg4[%c0_7, %c0_8] : memref<528x128xbf16, #tpu.memory_space<vmem>>, vector<528x128xbf16>
    %cst_9 = arith.constant dense<0.000000e+00> : vector<8x128xf32>
    %13 = tpu.matmul %9, %12, %cst_9 {dimension_numbers = #tpu.dot_dimension_numbers<[1], [0], [0], [1], [0, 0, 1, 1], [], []>} : vector<8x528xbf16>, vector<528x128xbf16>, vector<8x128xf32> -> vector<8x128xf32>
    %14 = arith.addf %11, %13 : vector<8x128xf32>
    %c0_10 = arith.constant 0 : index
    %c0_11 = arith.constant 0 : index
    %15 = vector.load %arg5[%c0_10, %c0_11] : memref<1x128xf32, #tpu.memory_space<vmem>>, vector<1x128xf32>
    %16 = vector.broadcast %15 : vector<1x128xf32> to vector<8x128xf32>
    %17 = arith.addf %14, %16 : vector<8x128xf32>
    %c0_12 = arith.constant 0 : index
    %c0_13 = arith.constant 0 : index
    %18 = vector.load %arg6[%c0_12, %c0_13] : memref<8x128xf32, #tpu.memory_space<vmem>>, vector<8x128xf32>
    tpu.vector_store %arg6[%c0_12, %c0_13], %17 {strides = array<i32>} : memref<8x128xf32, #tpu.memory_space<vmem>>, vector<8x128xf32>,
    return
  }
  func.func @transform_0(%arg0: i32) -> (i32, i32) {
    %c0_i32 = arith.constant 0 : i32
    %c0_i32_0 = arith.constant 0 : i32
    return %arg0, %c0_i32 : i32, i32
  }
  func.func @transform_1(%arg0: i32) -> (i32, i32) {
    %c0_i32 = arith.constant 0 : i32
    %c0_i32_0 = arith.constant 0 : i32
    %c0_i32_1 = arith.constant 0 : i32
    return %c0_i32, %c0_i32_0 : i32, i32
  }
  func.func @transform_2(%arg0: i32) -> (i32, i32) {
    %c0_i32 = arith.constant 0 : i32
    %c0_i32_0 = arith.constant 0 : i32
    %c0_i32_1 = arith.constant 0 : i32
    return %c0_i32, %c0_i32_0 : i32, i32
  }
  func.func @transform_3(%arg0: i32) -> (i32, i32) {
    %c0_i32 = arith.constant 0 : i32
    %c0_i32_0 = arith.constant 0 : i32
    %c0_i32_1 = arith.constant 0 : i32
    return %c0_i32, %c0_i32_0 : i32, i32
  }
  func.func @transform_4(%arg0: i32) -> (i32, i32) {
    %c0_i32 = arith.constant 0 : i32
    %c0_i32_0 = arith.constant 0 : i32
    %c0_i32_1 = arith.constant 0 : i32
    return %c0_i32, %c0_i32_0 : i32, i32
  }
  func.func @transform_5(%arg0: i32) -> (i32, i32) {
    %c0_i32 = arith.constant 0 : i32
    %c0_i32_0 = arith.constant 0 : i32
    return %arg0, %c0_i32 : i32, i32
  }
}

</mosaic_0001>

<llo_original>
// kernel: tpu_custom_call.1
$region0: #{tpu_custom_call.1}
  #allocation0 [shape = 'u32[]', space=smem, size = 0x4, offset = 0x4, fixed_abs, tag = 'smem constant byte address 0x4 - core index']
  #allocation1 [shape = 'u32[144,128]{1,0:T(1,128)}', space=vmem, size = 0x12000, scoped, tag = 'internal scratch']
  %s0 = inlined_call_operand.hbm [shape: s32[16,16], index: 0, kind: input, shape index: {}]
  %s1 = inlined_call_operand.hbm [shape: bf16[16,528], index: 1, kind: input, shape index: {}]
  %s2 = inlined_call_operand.hbm [shape: bf16[528,128], index: 2, kind: input, shape index: {}]
  %s3 = inlined_call_operand.hbm [shape: bf16[528,128], index: 3, kind: input, shape index: {}]
  %s4 = inlined_call_operand.vmem [shape: f32[1,128], index: 4, kind: input, shape index: {}]
  %s5 = inlined_call_operand.hbm [shape: f32[16,128], index: 5, kind: output, shape index: {}]
  %s6 = sld [smem:[#allocation0]]
  $region69: #{tpu_custom_call.1} parent=0
    _
  %s8 = ssub.s32 1, %s6
  %s9 = scalar_select 0, %s8, %s6
  $region1: #{tpu_custom_call.1} parent=0
    #allocation2 [shape = 'u8[8192]{0}', space=vmem, size = 0x2000, scoped, tag = 'input window, operand 0']
    #allocation3 [shape = 's32[2]{0}', space=sflag, size = 0x8, scoped, tag = 'scoped memory for tpu_custom_call.1']
    #allocation4 [shape = 's32[2]{0}', space=sflag, size = 0x8, scoped, tag = 'scoped memory for tpu_custom_call.1']
    #allocation5 [shape = 'u8[20480]{0}', space=vmem, size = 0x5000, scoped, tag = 'input window, operand 1, single buffered']
    #allocation6 [shape = 's32[1]{0}', space=sflag, size = 0x4, scoped, tag = 'scoped memory for tpu_custom_call.1']
    #allocation7 [shape = 'u8[135168]{0}', space=vmem, size = 0x21000, scoped, tag = 'input window, operand 2, single buffered']
    #allocation8 [shape = 'u8[135168]{0}', space=vmem, size = 0x21000, scoped, tag = 'input window, operand 3, single buffered']
    #allocation9 [shape = 's32[1]{0}', space=sflag, size = 0x4, scoped, tag = 'scoped memory for tpu_custom_call.1']
    #allocation10 [shape = 'u8[8192]{0}', space=vmem, size = 0x2000, scoped, tag = 'output window, operand 0']
    %10 = vsyncpa [#allocation3], 0
    %s11 = scalar_lea.sflag [#allocation3], 1
    %12 = vsyncpa %s11, 0
    %13 = vsyncpa [#allocation6], 0
    %14 = vsyncpa [#allocation9], 0
    %15 = vsyncpa [#allocation4], 0
    %s16 = scalar_lea.sflag [#allocation4], 1
    %17 = vsyncpa %s16, 0
    loop: start=0, step=1, limit=4
    $region2: #{tpu_custom_call.1} parent=1 // loop_pre_header
      _
    $region3: #{tpu_custom_call.1} parent=1 // loop_header
      %s19 = sphi 0, %s23
      %p20 = scmp.ge.s32.totalorder %s19, 4
      %s29 = sphi 0, %s31
      %s32 = sphi 0, %s29
      %s33 = sphi 0, %s32
      %s49 = sphi 0, %s33
      %s53 = sphi 0, %s53
      %s55 = sphi 0, %s53
      %s56 = sphi 0, %s55
      %s70 = sphi 0, %s56
      %s74 = sphi 0, %s74
      %s76 = sphi 0, %s74
      %s77 = sphi 0, %s76
      %s91 = sphi 0, %s77
      %s95 = sphi 0, %s95
      %s97 = sphi 0, %s95
      %s98 = sphi 0, %s97
      %s112 = sphi 0, %s98
      %s116 = sphi 0, %s116
      %s118 = sphi 0, %s116
      %s119 = sphi 0, %s118
      %s133 = sphi 0, %s119
      %s139 = sphi 0, %s141
      %s142 = sphi 0, %s139
      %s143 = sphi 0, %s142
      %s159 = sphi 0, %s143
    $region4: #{tpu_custom_call.1} parent=1 // loop_header_branch
      %22 = sbr.rel (%p20) target = $region8
    $region5: #{tpu_custom_call.1} parent=1 // loop_body
      %s24 = ssub.s32 %s19, 1
      %s25 = ssub.s32 %s19, 2
      %s26 = sadd.s32 %s19, 1
      %s27 = ssub.s32 %s19, %s26
      %p28 = scmp.eq.s32.totalorder %s27, 0
      %s30 = sadd.s32 %s29, 1
      %s31 = scalar_select %p28, %s29, %s30
      %p34 = pneg %p28
      %p35 = scmp.eq.s32.totalorder %s19, 1
      %p36 = por %p34, %p35
      %p37 = scmp.ne.s32.totalorder %s29, %s32
      %p38 = scmp.eq.s32.totalorder %s19, 0
      %p39 = por %p37, %p38
      %p40 = scmp.ne.s32.totalorder %s29, %s32
      %p41 = scmp.eq.s32.totalorder %s24, 1
      %p42 = por %p40, %p41
      %p43 = scmp.ne.s32.totalorder %s32, %s33
      %p44 = scmp.eq.s32.totalorder %s24, 0
      %p45 = por %p43, %p44
      %p46 = scmp.ne.s32.totalorder %s32, %s33
      %p47 = scmp.eq.s32.totalorder %s25, 1
      %p48 = por %p46, %p47
      %p50 = scmp.ne.s32.totalorder %s33, %s49
      %p51 = scmp.eq.s32.totalorder %s25, 0
      %p52 = por %p50, %p51
      %s54 = sadd.s32 %s53, 1
      %p57 = scmp.eq.s32.totalorder %s19, 1
      %p58 = scmp.ne.s32.totalorder %s53, %s55
      %p59 = scmp.eq.s32.totalorder %s19, 0
      %p60 = por %p58, %p59
      %p61 = scmp.ne.s32.totalorder %s53, %s55
      %p62 = scmp.eq.s32.totalorder %s24, 1
      %p63 = por %p61, %p62
      %p64 = scmp.ne.s32.totalorder %s55, %s56
      %p65 = scmp.eq.s32.totalorder %s24, 0
      %p66 = por %p64, %p65
      %p67 = scmp.ne.s32.totalorder %s55, %s56
      %p68 = scmp.eq.s32.totalorder %s25, 1
      %p69 = por %p67, %p68
      %p71 = scmp.ne.s32.totalorder %s56, %s70
      %p72 = scmp.eq.s32.totalorder %s25, 0
      %p73 = por %p71, %p72
      %s75 = sadd.s32 %s74, 1
      %p78 = scmp.eq.s32.totalorder %s19, 1
      %p79 = scmp.ne.s32.totalorder %s74, %s76
      %p80 = scmp.eq.s32.totalorder %s19, 0
      %p81 = por %p79, %p80
      %p82 = scmp.ne.s32.totalorder %s74, %s76
      %p83 = scmp.eq.s32.totalorder %s24, 1
      %p84 = por %p82, %p83
      %p85 = scmp.ne.s32.totalorder %s76, %s77
      %p86 = scmp.eq.s32.totalorder %s24, 0
      %p87 = por %p85, %p86
      %p88 = scmp.ne.s32.totalorder %s76, %s77
      %p89 = scmp.eq.s32.totalorder %s25, 1
      %p90 = por %p88, %p89
      %p92 = scmp.ne.s32.totalorder %s77, %s91
      %p93 = scmp.eq.s32.totalorder %s25, 0
      %p94 = por %p92, %p93
      %s96 = sadd.s32 %s95, 1
      %p99 = scmp.eq.s32.totalorder %s19, 1
      %p100 = scmp.ne.s32.totalorder %s95, %s97
      %p101 = scmp.eq.s32.totalorder %s19, 0
      %p102 = por %p100, %p101
      %p103 = scmp.ne.s32.totalorder %s95, %s97
      %p104 = scmp.eq.s32.totalorder %s24, 1
      %p105 = por %p103, %p104
      %p106 = scmp.ne.s32.totalorder %s97, %s98
      %p107 = scmp.eq.s32.totalorder %s24, 0
      %p108 = por %p106, %p107
      %p109 = scmp.ne.s32.totalorder %s97, %s98
      %p110 = scmp.eq.s32.totalorder %s25, 1
      %p111 = por %p109, %p110
      %p113 = scmp.ne.s32.totalorder %s98, %s112
      %p114 = scmp.eq.s32.totalorder %s25, 0
      %p115 = por %p113, %p114
      %s117 = sadd.s32 %s116, 1
      %p120 = scmp.eq.s32.totalorder %s19, 1
      %p121 = scmp.ne.s32.totalorder %s116, %s118
      %p122 = scmp.eq.s32.totalorder %s19, 0
      %p123 = por %p121, %p122
      %p124 = scmp.ne.s32.totalorder %s116, %s118
      %p125 = scmp.eq.s32.totalorder %s24, 1
      %p126 = por %p124, %p125
      %p127 = scmp.ne.s32.totalorder %s118, %s119
      %p128 = scmp.eq.s32.totalorder %s24, 0
      %p129 = por %p127, %p128
      %p130 = scmp.ne.s32.totalorder %s118, %s119
      %p131 = scmp.eq.s32.totalorder %s25, 1
      %p132 = por %p130, %p131
      %p134 = scmp.ne.s32.totalorder %s119, %s133
      %p135 = scmp.eq.s32.totalorder %s25, 0
      %p136 = por %p134, %p135
      %s137 = ssub.s32 %s19, %s26
      %p138 = scmp.eq.s32.totalorder %s137, 0
      %s140 = sadd.s32 %s139, 1
      %s141 = scalar_select %p138, %s139, %s140
      %p144 = pneg %p138
      %p145 = scmp.eq.s32.totalorder %s19, 1
      %p146 = por %p144, %p145
      %p147 = scmp.ne.s32.totalorder %s139, %s142
      %p148 = scmp.eq.s32.totalorder %s19, 0
      %p149 = por %p147, %p148
      %p150 = scmp.ne.s32.totalorder %s139, %s142
      %p151 = scmp.eq.s32.totalorder %s24, 1
      %p152 = por %p150, %p151
      %p153 = scmp.ne.s32.totalorder %s142, %s143
      %p154 = scmp.eq.s32.totalorder %s24, 0
      %p155 = por %p153, %p154
      %p156 = scmp.ne.s32.totalorder %s142, %s143
      %p157 = scmp.eq.s32.totalorder %s25, 1
      %p158 = por %p156, %p157
      %p160 = scmp.ne.s32.totalorder %s143, %s159
      %p161 = scmp.eq.s32.totalorder %s25, 0
      %p162 = por %p160, %p161
      %p163 = scmp.le.s32.totalorder 1, %s19
      %p164 = scmp.lt.s32.totalorder %s19, 3
      %p165 = pnand %p163, %p164
      %p166 = pneg %p165
      // Predicated region
      $region9: #{tpu_custom_call.1} parent=5 // pred_check
        _
      $region10: #{tpu_custom_call.1} parent=5 // pred_check_branch
        %168 = sbr.rel (%p165) target = $region12
      $region11: #{tpu_custom_call.1} parent=5 // pred_region
        %s169 = ssub.s32 %s19, 1
        // Predicated region
        $region13: #{tpu_custom_call.1} parent=11 // pred_check
          %p170 = pneg %p66
        $region14: #{tpu_custom_call.1} parent=11 // pred_check_branch
          %172 = sbr.rel (%p170) target = $region16
        $region15: #{tpu_custom_call.1} parent=11 // pred_region
          %s174 = ssub.s32 640, 640
          %175 = vsyncadd [#allocation6], %s174
          %s176 = sshll.u32 [#allocation5], 4
          %s177 = int_to_ptr.vmem [resolvable:$true] %s176
          %182 = dma.hbm_to_vmem [thread:$0]  %s1, 640, %s177, [#allocation6], 320, 320, 20
        $region16: #{tpu_custom_call.1} parent=11 // pred_fallthru
          _
        // Predicated region
        $region17: #{tpu_custom_call.1} parent=11 // pred_check
          %p183 = pneg %p87
        $region18: #{tpu_custom_call.1} parent=11 // pred_check_branch
          %185 = sbr.rel (%p183) target = $region20
        $region19: #{tpu_custom_call.1} parent=11 // pred_region
          %s187 = ssub.s32 4224, 4224
          %188 = vsyncadd [#allocation6], %s187
          %s189 = sshll.u32 [#allocation7], 4
          %s190 = int_to_ptr.vmem [resolvable:$true] %s189
          %195 = dma.hbm_to_vmem [thread:$0]  %s2, 4224, %s190, [#allocation6], 64, 64, 4
        $region20: #{tpu_custom_call.1} parent=11 // pred_fallthru
          _
        // Predicated region
        $region21: #{tpu_custom_call.1} parent=11 // pred_check
          %p196 = pneg %p108
        $region22: #{tpu_custom_call.1} parent=11 // pred_check_branch
          %198 = sbr.rel (%p196) target = $region24
        $region23: #{tpu_custom_call.1} parent=11 // pred_region
          %s200 = ssub.s32 4224, 4224
          %201 = vsyncadd [#allocation9], %s200
          %s202 = sshll.u32 [#allocation8], 4
          %s203 = int_to_ptr.vmem [resolvable:$true] %s202
          %208 = dma.hbm_to_vmem [thread:$0]  %s3, 4224, %s203, [#allocation9], 64, 64, 4
        $region24: #{tpu_custom_call.1} parent=11 // pred_fallthru
          _
        // Predicated region
        $region25: #{tpu_custom_call.1} parent=11 // pred_check
          %p209 = pneg %p129
        $region26: #{tpu_custom_call.1} parent=11 // pred_check_branch
          %211 = sbr.rel (%p209) target = $region28
        $region27: #{tpu_custom_call.1} parent=11 // pred_region
          _
        $region28: #{tpu_custom_call.1} parent=11 // pred_fallthru
          _
      $region12: #{tpu_custom_call.1} parent=5 // pred_fallthru
        _
      %p212 = scmp.lt.s32.totalorder %s19, 2
      // Predicated region
      $region29: #{tpu_custom_call.1} parent=5 // pred_check
        %p213 = pneg %p212
      $region30: #{tpu_custom_call.1} parent=5 // pred_check_branch
        %215 = sbr.rel (%p213) target = $region32
      $region31: #{tpu_custom_call.1} parent=5 // pred_region
        // Predicated region
        $region33: #{tpu_custom_call.1} parent=31 // pred_check
          %p216 = pneg %p39
        $region34: #{tpu_custom_call.1} parent=31 // pred_check_branch
          %218 = sbr.rel (%p216) target = $region36
        $region35: #{tpu_custom_call.1} parent=31 // pred_region
          %s219 = sand.u32 %s29, 1
          %s220 = scalar_lea.sflag [#allocation3], %s219
          %s221 = sand.u32 %s29, 1
          %s222 = smul.addr %s221, 8
          %s223 = scalar_lea.vmem [#allocation2], %s222
          %s225 = ssub.s32 128, 128
          %226 = vsyncadd %s220, %s225
          %s227 = smul.addr %s19, 128
          %s228 = scalar_lea.hbm %s0, %s227
          %s230 = sshll.u32 %s223, 4
          %s231 = int_to_ptr.vmem [resolvable:$true] %s230
          %233 = dma.hbm_to_vmem [thread:$0]  %s228, 128, %s231, %s220
        $region36: #{tpu_custom_call.1} parent=31 // pred_fallthru
          _
      $region32: #{tpu_custom_call.1} parent=5 // pred_fallthru
        _
      %p234 = scmp.le.s32.totalorder 1, %s19
      %p235 = scmp.lt.s32.totalorder %s19, 3
      %p236 = pnand %p234, %p235
      %p237 = pneg %p236
      // Predicated region
      $region37: #{tpu_custom_call.1} parent=5 // pred_check
        _
      $region38: #{tpu_custom_call.1} parent=5 // pred_check_branch
        %239 = sbr.rel (%p236) target = $region40
      $region39: #{tpu_custom_call.1} parent=5 // pred_region
        %s240 = ssub.s32 %s19, 1
        %s241 = sand.u32 %s32, 1
        %s242 = scalar_lea.sflag [#allocation3], %s241
        %s243 = sand.u32 %s32, 1
        %s244 = smul.addr %s243, 8
        %s245 = scalar_lea.vmem [#allocation2], %s244
        // Predicated region
        $region41: #{tpu_custom_call.1} parent=39 // pred_check
          %p246 = pneg %p45
        $region42: #{tpu_custom_call.1} parent=39 // pred_check_branch
          %248 = sbr.rel (%p246) target = $region44
        $region43: #{tpu_custom_call.1} parent=39 // pred_region
          %249 = dma.done %s242, 128
        $region44: #{tpu_custom_call.1} parent=39 // pred_fallthru
          _
        // Predicated region
        $region45: #{tpu_custom_call.1} parent=39 // pred_check
          %p250 = pneg %p66
        $region46: #{tpu_custom_call.1} parent=39 // pred_check_branch
          %252 = sbr.rel (%p250) target = $region48
        $region47: #{tpu_custom_call.1} parent=39 // pred_region
          %253 = dma.done [#allocation6], 640
        $region48: #{tpu_custom_call.1} parent=39 // pred_fallthru
          _
        // Predicated region
        $region49: #{tpu_custom_call.1} parent=39 // pred_check
          %p254 = pneg %p87
        $region50: #{tpu_custom_call.1} parent=39 // pred_check_branch
          %256 = sbr.rel (%p254) target = $region52
        $region51: #{tpu_custom_call.1} parent=39 // pred_region
          %257 = dma.done [#allocation6], 4224
        $region52: #{tpu_custom_call.1} parent=39 // pred_fallthru
          _
        // Predicated region
        $region53: #{tpu_custom_call.1} parent=39 // pred_check
          %p258 = pneg %p108
        $region54: #{tpu_custom_call.1} parent=39 // pred_check_branch
          %260 = sbr.rel (%p258) target = $region56
        $region55: #{tpu_custom_call.1} parent=39 // pred_region
          %261 = dma.done [#allocation9], 4224
        $region56: #{tpu_custom_call.1} parent=39 // pred_fallthru
          _
        %s262 = sand.u32 %s32, 1
        %s263 = scalar_lea.sflag [#allocation3], %s262
        %s264 = sand.u32 %s32, 1
        %s265 = smul.addr %s264, 8
        %s266 = scalar_lea.vmem [#allocation2], %s265
        %p267 = pneg %p45
        %p268 = pneg %p42
        %p269 = pneg %p66
        %p270 = pneg %p63
        %p271 = pneg %p87
        %p272 = pneg %p84
        %p273 = pneg %p108
        %p274 = pneg %p105
        %p275 = pneg %p129
        %p276 = pneg %p126
        %p277 = pneg %p155
        %p278 = pneg %p152
        %s279 = sand.u32 %s142, 1
        %s280 = scalar_lea.sflag [#allocation4], %s279
        %s281 = sand.u32 %s142, 1
        %s282 = smul.addr %s281, 8
        %s283 = scalar_lea.vmem [#allocation10], %s282
        %v285 = vld [vmem:[%s245] sm:$0xff]
        %v286 = vcvt.s32.f32 %v285
        %v287 = vpack.c.bf16 %v286, %v286
        %v288 = vld [vmem:[#allocation5] sm:$0xff]
        %v289 = vld [vmem:[#allocation5 + $0x8] sm:$0xff]
        %v290 = vld [vmem:[#allocation5 + $0x10] sm:$0xf]
        %v291 = vld [vmem:[#allocation5 + $0x14] sm:$0xff]
        %v292 = vld [vmem:[#allocation5 + $0x1c] sm:$0xff]
        %v293 = vld [vmem:[#allocation5 + $0x24] sm:$0xf]
        %v300 = vunpack.c.l.b16 %v288
        %v301 = vunpack.c.h.b16 %v288
        %v302 = vunpack.c.l.b16 %v289
        %v303 = vunpack.c.h.b16 %v289
        %v304 = vunpack.c.l.b16 %v290
        %v305 = vunpack.c.l.b16 %v291
        %v306 = vunpack.c.h.b16 %v291
        %v307 = vunpack.c.l.b16 %v292
        %v308 = vunpack.c.h.b16 %v292
        %v309 = vunpack.c.l.b16 %v293
        %v310 = vpack.c.b16 %v305, %v300
        %v311 = vpack.c.b16 %v306, %v301
        %v312 = vpack.c.b16 %v307, %v302
        %v313 = vpack.c.b16 %v308, %v303
        %v314 = vpack.c.b16 %v309, %v304
        %vm320 = vcmask 130048
        %v322 = vsel %vm320, %v287, 0
        %324 = vmatprep.subr.bf16.mxu0 %v311
        %325 = vmatpush1.bf16.msra.mxu0 %v310
        %326 = vmatprep.subr.bf16.mxu0 0
        %327 = vmatpush1.bf16.msra.mxu0 0
        %328 = vmatprep.subr.bf16.mxu0 0
        %329 = vmatpush1.bf16.msra.mxu0 0
        %330 = vmatprep.subr.bf16.mxu0 0
        %331 = vmatpush1.bf16.msra.mxu0 0
        %332 = vmatprep.subr.bf16.mxu0 0
        %333 = vmatpush1.bf16.msra.mxu0 0
        %334 = vmatprep.subr.bf16.mxu0 0
        %335 = vmatpush1.bf16.msra.mxu0 0
        %336 = vmatprep.subr.bf16.mxu0 0
        %337 = vmatpush1.bf16.msra.mxu0 0
        %338 = vmatprep.subr.bf16.mxu0 0
        %339 = vmatpush1.bf16.msra.mxu0 0
        %340 = vmatprep.subr.bf16.mxu0 0
        %341 = vmatpush1.bf16.msra.mxu0 0
        %342 = vmatprep.subr.bf16.mxu0 0
        %343 = vmatpush1.bf16.msra.mxu0 0
        %344 = vmatprep.subr.bf16.mxu0 0
        %345 = vmatpush1.bf16.msra.mxu0 0
        %346 = vmatprep.subr.bf16.mxu0 0
        %347 = vmatpush1.bf16.msra.mxu0 0
        %348 = vmatprep.subr.bf16.mxu0 0
        %349 = vmatpush1.bf16.msra.mxu0 0
        %350 = vmatprep.subr.bf16.mxu0 0
        %351 = vmatpush1.bf16.msra.mxu0 0
        %352 = vmatprep.subr.bf16.mxu0 0
        %353 = vmatpush1.bf16.msra.mxu0 0
        %354 = vmatprep.subr.bf16.mxu0 0
        %355 = vmatpush1.bf16.msra.mxu0 0
        %356 = vmatprep.mubr.bf16.mxu0 0
        %357 = vmatmul.mubr.bf16.gmra.mrb[0].mxu0 %v322
        %v358 = vpop.f32.mrb[0].mxu0
        %v359 = vadd.f32 0.0, %v358
        %v360 = vpop.f32.mrb[0].mxu0
        %v361 = vadd.f32 0.0, %v360
        %v362 = vpop.f32.mrb[0].mxu0
        %v363 = vpop.f32.mrb[0].mxu0
        %364 = vdwg.mxu0
        %365 = vmatprep.subr.bf16.mxu0 %v313
        %366 = vmatpush1.bf16.msra.mxu0 %v312
        %367 = vmatprep.subr.bf16.mxu0 0
        %368 = vmatpush1.bf16.msra.mxu0 0
        %369 = vmatprep.subr.bf16.mxu0 0
        %370 = vmatpush1.bf16.msra.mxu0 0
        %371 = vmatprep.subr.bf16.mxu0 0
        %372 = vmatpush1.bf16.msra.mxu0 0
        %373 = vmatprep.subr.bf16.mxu0 0
        %374 = vmatpush1.bf16.msra.mxu0 0
        %375 = vmatprep.subr.bf16.mxu0 0
        %376 = vmatpush1.bf16.msra.mxu0 0
        %377 = vmatprep.subr.bf16.mxu0 0
        %378 = vmatpush1.bf16.msra.mxu0 0
        %379 = vmatprep.subr.bf16.mxu0 0
        %380 = vmatpush1.bf16.msra.mxu0 0
        %381 = vmatprep.subr.bf16.mxu0 0
        %382 = vmatpush1.bf16.msra.mxu0 0
        %383 = vmatprep.subr.bf16.mxu0 0
        %384 = vmatpush1.bf16.msra.mxu0 0
        %385 = vmatprep.subr.bf16.mxu0 0
        %386 = vmatpush1.bf16.msra.mxu0 0
        %387 = vmatprep.subr.bf16.mxu0 0
        %388 = vmatpush1.bf16.msra.mxu0 0
        %389 = vmatprep.subr.bf16.mxu0 0
        %390 = vmatpush1.bf16.msra.mxu0 0
        %391 = vmatprep.subr.bf16.mxu0 0
        %392 = vmatpush1.bf16.msra.mxu0 0
        %393 = vmatprep.subr.bf16.mxu0 0
        %394 = vmatpush1.bf16.msra.mxu0 0
        %395 = vmatprep.subr.bf16.mxu0 0
        %396 = vmatpush1.bf16.msra.mxu0 0
        %397 = vmatprep.mubr.bf16.mxu0 0
        %398 = vmatmul.mubr.bf16.gmra.mrb[0].mxu0 %v322
        %v399 = vpop.f32.mrb[0].mxu0
        %v400 = vadd.f32 0.0, %v399
        %v401 = vpop.f32.mrb[0].mxu0
        %v402 = vadd.f32 0.0, %v401
        %v403 = vpop.f32.mrb[0].mxu0
        %v404 = vpop.f32.mrb[0].mxu0
        %405 = vdwg.mxu0
        %406 = vmatprep.subr.bf16.mxu0 0
        %407 = vmatpush1.bf16.msra.mxu0 %v314
        %408 = vmatprep.subr.bf16.mxu0 0
        %409 = vmatpush1.bf16.msra.mxu0 0
        %410 = vmatprep.subr.bf16.mxu0 0
        %411 = vmatpush1.bf16.msra.mxu0 0
        %412 = vmatprep.subr.bf16.mxu0 0
        %413 = vmatpush1.bf16.msra.mxu0 0
        %414 = vmatprep.subr.bf16.mxu0 0
        %415 = vmatpush1.bf16.msra.mxu0 0
        %416 = vmatprep.subr.bf16.mxu0 0
        %417 = vmatpush1.bf16.msra.mxu0 0
        %418 = vmatprep.subr.bf16.mxu0 0
        %419 = vmatpush1.bf16.msra.mxu0 0
        %420 = vmatprep.subr.bf16.mxu0 0
        %421 = vmatpush1.bf16.msra.mxu0 0
        %422 = vmatprep.subr.bf16.mxu0 0
        %423 = vmatpush1.bf16.msra.mxu0 0
        %424 = vmatprep.subr.bf16.mxu0 0
        %425 = vmatpush1.bf16.msra.mxu0 0
        %426 = vmatprep.subr.bf16.mxu0 0
        %427 = vmatpush1.bf16.msra.mxu0 0
        %428 = vmatprep.subr.bf16.mxu0 0
        %429 = vmatpush1.bf16.msra.mxu0 0
        %430 = vmatprep.subr.bf16.mxu0 0
        %431 = vmatpush1.bf16.msra.mxu0 0
        %432 = vmatprep.subr.bf16.mxu0 0
        %433 = vmatpush1.bf16.msra.mxu0 0
        %434 = vmatprep.subr.bf16.mxu0 0
        %435 = vmatpush1.bf16.msra.mxu0 0
        %436 = vmatprep.subr.bf16.mxu0 0
        %437 = vmatpush1.bf16.msra.mxu0 0
        %438 = vmatprep.mubr.bf16.mxu0 0
        %439 = vmatmul.mubr.bf16.gmra.mrb[0].mxu0 %v322
        %v440 = vpop.f32.mrb[0].mxu0
        %v441 = vadd.f32 0.0, %v440
        %v442 = vpop.f32.mrb[0].mxu0
        %v443 = vpop.f32.mrb[0].mxu0
        %v444 = vpop.f32.mrb[0].mxu0
        %445 = vdwg.mxu0
        %vm446 = vcmp.eq.f32.partialorder %v359, 0.0
        %vm447 = vcmp.eq.f32.partialorder %v361, 0.0
        %vm448 = vcmp.eq.f32.partialorder %v400, 0.0
        %vm449 = vcmp.eq.f32.partialorder %v402, 0.0
        %vm450 = vcmp.eq.f32.partialorder %v441, 0.0
        %v451 = vsel %vm446, 1, 0
        %v452 = vsel %vm447, 1, 0
        %v453 = vsel %vm448, 1, 0
        %v454 = vsel %vm449, 1, 0
        %v455 = vsel %vm450, 1, 0
        %v456 = vcvt.s32.f32 %v451
        %v457 = vcvt.s32.f32 %v452
        %v458 = vcvt.s32.f32 %v453
        %v459 = vcvt.s32.f32 %v454
        %v460 = vcvt.s32.f32 %v455
        %v461 = vpack.c.bf16 %v456, %v456
        %v462 = vpack.c.bf16 %v457, %v457
        %v463 = vpack.c.bf16 %v458, %v458
        %v464 = vpack.c.bf16 %v459, %v459
        %v465 = vpack.c.bf16 %v460, %v460
        %v466 = vld [vmem:[#allocation7] sm:$0xf]
        %v467 = vld [vmem:[#allocation7 + $0x4] sm:$0xf]
        %v468 = vld [vmem:[#allocation7 + $0x8] sm:$0xf]
        %v469 = vld [vmem:[#allocation7 + $0xc] sm:$0xf]
        %v470 = vld [vmem:[#allocation7 + $0x10] sm:$0xf]
        %v471 = vld [vmem:[#allocation7 + $0x14] sm:$0xf]
        %v472 = vld [vmem:[#allocation7 + $0x18] sm:$0xf]
        %v473 = vld [vmem:[#allocation7 + $0x1c] sm:$0xf]
        %v474 = vld [vmem:[#allocation7 + $0x20] sm:$0xf]
        %v475 = vld [vmem:[#allocation7 + $0x24] sm:$0xf]
        %v476 = vld [vmem:[#allocation7 + $0x28] sm:$0xf]
        %v477 = vld [vmem:[#allocation7 + $0x2c] sm:$0xf]
        %v478 = vld [vmem:[#allocation7 + $0x30] sm:$0xf]
        %v479 = vld [vmem:[#allocation7 + $0x34] sm:$0xf]
        %v480 = vld [vmem:[#allocation7 + $0x38] sm:$0xf]
        %v481 = vld [vmem:[#allocation7 + $0x3c] sm:$0xf]
        %v482 = vld [vmem:[#allocation7 + $0x40] sm:$0xf]
        %v483 = vld [vmem:[#allocation7 + $0x44] sm:$0xf]
        %v484 = vld [vmem:[#allocation7 + $0x48] sm:$0xf]
        %v485 = vld [vmem:[#allocation7 + $0x4c] sm:$0xf]
        %v486 = vld [vmem:[#allocation7 + $0x50] sm:$0xf]
        %v487 = vld [vmem:[#allocation7 + $0x54] sm:$0xf]
        %v488 = vld [vmem:[#allocation7 + $0x58] sm:$0xf]
        %v489 = vld [vmem:[#allocation7 + $0x5c] sm:$0xf]
        %v490 = vld [vmem:[#allocation7 + $0x60] sm:$0xf]
        %v491 = vld [vmem:[#allocation7 + $0x64] sm:$0xf]
        %v492 = vld [vmem:[#allocation7 + $0x68] sm:$0xf]
        %v493 = vld [vmem:[#allocation7 + $0x6c] sm:$0xf]
        %v494 = vld [vmem:[#allocation7 + $0x70] sm:$0xf]
        %v495 = vld [vmem:[#allocation7 + $0x74] sm:$0xf]
        %v496 = vld [vmem:[#allocation7 + $0x78] sm:$0xf]
        %v497 = vld [vmem:[#allocation7 + $0x7c] sm:$0xf]
        %v498 = vld [vmem:[#allocation7 + $0x80] sm:$0xf]
        %v499 = vld [vmem:[#allocation7 + $0x84] sm:$0xf]
        %v500 = vld [vmem:[#allocation7 + $0x88] sm:$0xf]
        %v501 = vld [vmem:[#allocation7 + $0x8c] sm:$0xf]
        %v502 = vld [vmem:[#allocation7 + $0x90] sm:$0xf]
        %v503 = vld [vmem:[#allocation7 + $0x94] sm:$0xf]
        %v504 = vld [vmem:[#allocation7 + $0x98] sm:$0xf]
        %v505 = vld [vmem:[#allocation7 + $0x9c] sm:$0xf]
        %v506 = vld [vmem:[#allocation7 + $0xa0] sm:$0xf]
        %v507 = vld [vmem:[#allocation7 + $0xa4] sm:$0xf]
        %v508 = vld [vmem:[#allocation7 + $0xa8] sm:$0xf]
        %v509 = vld [vmem:[#allocation7 + $0xac] sm:$0xf]
        %v510 = vld [vmem:[#allocation7 + $0xb0] sm:$0xf]
        %v511 = vld [vmem:[#allocation7 + $0xb4] sm:$0xf]
        %v512 = vld [vmem:[#allocation7 + $0xb8] sm:$0xf]
        %v513 = vld [vmem:[#allocation7 + $0xbc] sm:$0xf]
        %v514 = vld [vmem:[#allocation7 + $0xc0] sm:$0xf]
        %v515 = vld [vmem:[#allocation7 + $0xc4] sm:$0xf]
        %v516 = vld [vmem:[#allocation7 + $0xc8] sm:$0xf]
        %v517 = vld [vmem:[#allocation7 + $0xcc] sm:$0xf]
        %v518 = vld [vmem:[#allocation7 + $0xd0] sm:$0xf]
        %v519 = vld [vmem:[#allocation7 + $0xd4] sm:$0xf]
        %v520 = vld [vmem:[#allocation7 + $0xd8] sm:$0xf]
        %v521 = vld [vmem:[#allocation7 + $0xdc] sm:$0xf]
        %v522 = vld [vmem:[#allocation7 + $0xe0] sm:$0xf]
        %v523 = vld [vmem:[#allocation7 + $0xe4] sm:$0xf]
        %v524 = vld [vmem:[#allocation7 + $0xe8] sm:$0xf]
        %v525 = vld [vmem:[#allocation7 + $0xec] sm:$0xf]
        %v526 = vld [vmem:[#allocation7 + $0xf0] sm:$0xf]
        %v527 = vld [vmem:[#allocation7 + $0xf4] sm:$0xf]
        %v528 = vld [vmem:[#allocation7 + $0xf8] sm:$0xf]
        %v529 = vld [vmem:[#allocation7 + $0xfc] sm:$0xf]
        %v530 = vld [vmem:[#allocation7 + $0x100] sm:$0xf]
        %v531 = vld [vmem:[#allocation7 + $0x104] sm:$0xf]
        %v532 = vld [vmem:[#allocation8] sm:$0xf]
        %v533 = vld [vmem:[#allocation8 + $0x4] sm:$0xf]
        %v534 = vld [vmem:[#allocation8 + $0x8] sm:$0xf]
        %v535 = vld [vmem:[#allocation8 + $0xc] sm:$0xf]
        %v536 = vld [vmem:[#allocation8 + $0x10] sm:$0xf]
        %v537 = vld [vmem:[#allocation8 + $0x14] sm:$0xf]
        %v538 = vld [vmem:[#allocation8 + $0x18] sm:$0xf]
        %v539 = vld [vmem:[#allocation8 + $0x1c] sm:$0xf]
        %v540 = vld [vmem:[#allocation8 + $0x20] sm:$0xf]
        %v541 = vld [vmem:[#allocation8 + $0x24] sm:$0xf]
        %v542 = vld [vmem:[#allocation8 + $0x28] sm:$0xf]
        %v543 = vld [vmem:[#allocation8 + $0x2c] sm:$0xf]
        %v544 = vld [vmem:[#allocation8 + $0x30] sm:$0xf]
        %v545 = vld [vmem:[#allocation8 + $0x34] sm:$0xf]
        %v546 = vld [vmem:[#allocation8 + $0x38] sm:$0xf]
        %v547 = vld [vmem:[#allocation8 + $0x3c] sm:$0xf]
        %v548 = vld [vmem:[#allocation8 + $0x40] sm:$0xf]
        %v549 = vld [vmem:[#allocation8 + $0x44] sm:$0xf]
        %v550 = vld [vmem:[#allocation8 + $0x48] sm:$0xf]
        %v551 = vld [vmem:[#allocation8 + $0x4c] sm:$0xf]
        %v552 = vld [vmem:[#allocation8 + $0x50] sm:$0xf]
        %v553 = vld [vmem:[#allocation8 + $0x54] sm:$0xf]
        %v554 = vld [vmem:[#allocation8 + $0x58] sm:$0xf]
        %v555 = vld [vmem:[#allocation8 + $0x5c] sm:$0xf]
        %v556 = vld [vmem:[#allocation8 + $0x60] sm:$0xf]
        %v557 = vld [vmem:[#allocation8 + $0x64] sm:$0xf]
        %v558 = vld [vmem:[#allocation8 + $0x68] sm:$0xf]
        %v559 = vld [vmem:[#allocation8 + $0x6c] sm:$0xf]
        %v560 = vld [vmem:[#allocation8 + $0x70] sm:$0xf]
        %v561 = vld [vmem:[#allocation8 + $0x74] sm:$0xf]
        %v562 = vld [vmem:[#allocation8 + $0x78] sm:$0xf]
        %v563 = vld [vmem:[#allocation8 + $0x7c] sm:$0xf]
        %v564 = vld [vmem:[#allocation8 + $0x80] sm:$0xf]
        %v565 = vld [vmem:[#allocation8 + $0x84] sm:$0xf]
        %v566 = vld [vmem:[#allocation8 + $0x88] sm:$0xf]
        %v567 = vld [vmem:[#allocation8 + $0x8c] sm:$0xf]
        %v568 = vld [vmem:[#allocation8 + $0x90] sm:$0xf]
        %v569 = vld [vmem:[#allocation8 + $0x94] sm:$0xf]
        %v570 = vld [vmem:[#allocation8 + $0x98] sm:$0xf]
        %v571 = vld [vmem:[#allocation8 + $0x9c] sm:$0xf]
        %v572 = vld [vmem:[#allocation8 + $0xa0] sm:$0xf]
        %v573 = vld [vmem:[#allocation8 + $0xa4] sm:$0xf]
        %v574 = vld [vmem:[#allocation8 + $0xa8] sm:$0xf]
        %v575 = vld [vmem:[#allocation8 + $0xac] sm:$0xf]
        %v576 = vld [vmem:[#allocation8 + $0xb0] sm:$0xf]
        %v577 = vld [vmem:[#allocation8 + $0xb4] sm:$0xf]
        %v578 = vld [vmem:[#allocation8 + $0xb8] sm:$0xf]
        %v579 = vld [vmem:[#allocation8 + $0xbc] sm:$0xf]
        %v580 = vld [vmem:[#allocation8 + $0xc0] sm:$0xf]
        %v581 = vld [vmem:[#allocation8 + $0xc4] sm:$0xf]
        %v582 = vld [vmem:[#allocation8 + $0xc8] sm:$0xf]
        %v583 = vld [vmem:[#allocation8 + $0xcc] sm:$0xf]
        %v584 = vld [vmem:[#allocation8 + $0xd0] sm:$0xf]
        %v585 = vld [vmem:[#allocation8 + $0xd4] sm:$0xf]
        %v586 = vld [vmem:[#allocation8 + $0xd8] sm:$0xf]
        %v587 = vld [vmem:[#allocation8 + $0xdc] sm:$0xf]
        %v588 = vld [vmem:[#allocation8 + $0xe0] sm:$0xf]
        %v589 = vld [vmem:[#allocation8 + $0xe4] sm:$0xf]
        %v590 = vld [vmem:[#allocation8 + $0xe8] sm:$0xf]
        %v591 = vld [vmem:[#allocation8 + $0xec] sm:$0xf]
        %v592 = vld [vmem:[#allocation8 + $0xf0] sm:$0xf]
        %v593 = vld [vmem:[#allocation8 + $0xf4] sm:$0xf]
        %v594 = vld [vmem:[#allocation8 + $0xf8] sm:$0xf]
        %v595 = vld [vmem:[#allocation8 + $0xfc] sm:$0xf]
        %v596 = vld [vmem:[#allocation8 + $0x100] sm:$0xf]
        %v597 = vld [vmem:[#allocation8 + $0x104] sm:$0xf]
        %v664 = vunpack.c.l.b16 %v532
        %v665 = vunpack.c.l.b16 %v533
        %v666 = vunpack.c.l.b16 %v534
        %v667 = vunpack.c.l.b16 %v535
        %v668 = vunpack.c.l.b16 %v536
        %v669 = vunpack.c.l.b16 %v537
        %v670 = vunpack.c.l.b16 %v538
        %v671 = vunpack.c.l.b16 %v539
        %v672 = vunpack.c.l.b16 %v540
        %v673 = vunpack.c.l.b16 %v541
        %v674 = vunpack.c.l.b16 %v542
        %v675 = vunpack.c.l.b16 %v543
        %v676 = vunpack.c.l.b16 %v544
        %v677 = vunpack.c.l.b16 %v545
        %v678 = vunpack.c.l.b16 %v546
        %v679 = vunpack.c.l.b16 %v547
        %v680 = vunpack.c.l.b16 %v548
        %v681 = vunpack.c.l.b16 %v549
        %v682 = vunpack.c.l.b16 %v550
        %v683 = vunpack.c.l.b16 %v551
        %v684 = vunpack.c.l.b16 %v552
        %v685 = vunpack.c.l.b16 %v553
        %v686 = vunpack.c.l.b16 %v554
        %v687 = vunpack.c.l.b16 %v555
        %v688 = vunpack.c.l.b16 %v556
        %v689 = vunpack.c.l.b16 %v557
        %v690 = vunpack.c.l.b16 %v558
        %v691 = vunpack.c.l.b16 %v559
        %v692 = vunpack.c.l.b16 %v560
        %v693 = vunpack.c.l.b16 %v561
        %v694 = vunpack.c.l.b16 %v562
        %v695 = vunpack.c.l.b16 %v563
        %v696 = vunpack.c.l.b16 %v564
        %v697 = vunpack.c.l.b16 %v565
        %v698 = vunpack.c.l.b16 %v566
        %v699 = vunpack.c.l.b16 %v567
        %v700 = vunpack.c.l.b16 %v568
        %v701 = vunpack.c.l.b16 %v569
        %v702 = vunpack.c.l.b16 %v570
        %v703 = vunpack.c.l.b16 %v571
        %v704 = vunpack.c.l.b16 %v572
        %v705 = vunpack.c.l.b16 %v573
        %v706 = vunpack.c.l.b16 %v574
        %v707 = vunpack.c.l.b16 %v575
        %v708 = vunpack.c.l.b16 %v576
        %v709 = vunpack.c.l.b16 %v577
        %v710 = vunpack.c.l.b16 %v578
        %v711 = vunpack.c.l.b16 %v579
        %v712 = vunpack.c.l.b16 %v580
        %v713 = vunpack.c.l.b16 %v581
        %v714 = vunpack.c.l.b16 %v582
        %v715 = vunpack.c.l.b16 %v583
        %v716 = vunpack.c.l.b16 %v584
        %v717 = vunpack.c.l.b16 %v585
        %v718 = vunpack.c.l.b16 %v586
        %v719 = vunpack.c.l.b16 %v587
        %v720 = vunpack.c.l.b16 %v588
        %v721 = vunpack.c.l.b16 %v589
        %v722 = vunpack.c.l.b16 %v590
        %v723 = vunpack.c.l.b16 %v591
        %v724 = vunpack.c.l.b16 %v592
        %v725 = vunpack.c.l.b16 %v593
        %v726 = vunpack.c.l.b16 %v594
        %v727 = vunpack.c.l.b16 %v595
        %v728 = vunpack.c.l.b16 %v596
        %v729 = vunpack.c.l.b16 %v597
        %v730 = vpack.c.b16 %v665, %v664
        %v731 = vpack.c.b16 %v667, %v666
        %v732 = vpack.c.b16 %v669, %v668
        %v733 = vpack.c.b16 %v671, %v670
        %v734 = vpack.c.b16 %v673, %v672
        %v735 = vpack.c.b16 %v675, %v674
        %v736 = vpack.c.b16 %v677, %v676
        %v737 = vpack.c.b16 %v679, %v678
        %v738 = vpack.c.b16 %v681, %v680
        %v739 = vpack.c.b16 %v683, %v682
        %v740 = vpack.c.b16 %v685, %v684
        %v741 = vpack.c.b16 %v687, %v686
        %v742 = vpack.c.b16 %v689, %v688
        %v743 = vpack.c.b16 %v691, %v690
        %v744 = vpack.c.b16 %v693, %v692
        %v745 = vpack.c.b16 %v695, %v694
        %v746 = vpack.c.b16 %v697, %v696
        %v747 = vpack.c.b16 %v699, %v698
        %v748 = vpack.c.b16 %v701, %v700
        %v749 = vpack.c.b16 %v703, %v702
        %v750 = vpack.c.b16 %v705, %v704
        %v751 = vpack.c.b16 %v707, %v706
        %v752 = vpack.c.b16 %v709, %v708
        %v753 = vpack.c.b16 %v711, %v710
        %v754 = vpack.c.b16 %v713, %v712
        %v755 = vpack.c.b16 %v715, %v714
        %v756 = vpack.c.b16 %v717, %v716
        %v757 = vpack.c.b16 %v719, %v718
        %v758 = vpack.c.b16 %v721, %v720
        %v759 = vpack.c.b16 %v723, %v722
        %v760 = vpack.c.b16 %v725, %v724
        %v761 = vpack.c.b16 %v727, %v726
        %v762 = vpack.c.b16 %v729, %v728
        %v797 = vsel %vm320, %v465, 0
        %799 = vmatprep.subr.bf16.mxu0 0
        %800 = vmatpush1.bf16.msra.mxu0 %v730
        %801 = vmatprep.subr.bf16.mxu0 0
        %802 = vmatpush1.bf16.msra.mxu0 %v731
        %803 = vmatprep.subr.bf16.mxu0 0
        %804 = vmatpush1.bf16.msra.mxu0 %v732
        %805 = vmatprep.subr.bf16.mxu0 0
        %806 = vmatpush1.bf16.msra.mxu0 %v733
        %807 = vmatprep.subr.bf16.mxu0 0
        %808 = vmatpush1.bf16.msra.mxu0 %v734
        %809 = vmatprep.subr.bf16.mxu0 0
        %810 = vmatpush1.bf16.msra.mxu0 %v735
        %811 = vmatprep.subr.bf16.mxu0 0
        %812 = vmatpush1.bf16.msra.mxu0 %v736
        %813 = vmatprep.subr.bf16.mxu0 0
        %814 = vmatpush1.bf16.msra.mxu0 %v737
        %815 = vmatprep.subr.bf16.mxu0 0
        %816 = vmatpush1.bf16.msra.mxu0 %v738
        %817 = vmatprep.subr.bf16.mxu0 0
        %818 = vmatpush1.bf16.msra.mxu0 %v739
        %819 = vmatprep.subr.bf16.mxu0 0
        %820 = vmatpush1.bf16.msra.mxu0 %v740
        %821 = vmatprep.subr.bf16.mxu0 0
        %822 = vmatpush1.bf16.msra.mxu0 %v741
        %823 = vmatprep.subr.bf16.mxu0 0
        %824 = vmatpush1.bf16.msra.mxu0 %v742
        %825 = vmatprep.subr.bf16.mxu0 0
        %826 = vmatpush1.bf16.msra.mxu0 %v743
        %827 = vmatprep.subr.bf16.mxu0 0
        %828 = vmatpush1.bf16.msra.mxu0 %v744
        %829 = vmatprep.subr.bf16.mxu0 0
        %830 = vmatpush1.bf16.msra.mxu0 %v745
        %831 = vmatprep.mubr.bf16.mxu0 %v462
        %832 = vmatmul.mubr.bf16.gmra.mrb[0].mxu0 %v461
        %v833 = vpop.f32.mrb[0].mxu0
        %v834 = vadd.f32 0.0, %v833
        %v835 = vpop.f32.mrb[0].mxu0
        %v836 = vpop.f32.mrb[0].mxu0
        %v837 = vpop.f32.mrb[0].mxu0
        %838 = vdwg.mxu0
        %839 = vmatprep.subr.bf16.mxu0 0
        %840 = vmatpush1.bf16.msra.mxu0 %v746
        %841 = vmatprep.subr.bf16.mxu0 0
        %842 = vmatpush1.bf16.msra.mxu0 %v747
        %843 = vmatprep.subr.bf16.mxu0 0
        %844 = vmatpush1.bf16.msra.mxu0 %v748
        %845 = vmatprep.subr.bf16.mxu0 0
        %846 = vmatpush1.bf16.msra.mxu0 %v749
        %847 = vmatprep.subr.bf16.mxu0 0
        %848 = vmatpush1.bf16.msra.mxu0 %v750
        %849 = vmatprep.subr.bf16.mxu0 0
        %850 = vmatpush1.bf16.msra.mxu0 %v751
        %851 = vmatprep.subr.bf16.mxu0 0
        %852 = vmatpush1.bf16.msra.mxu0 %v752
        %853 = vmatprep.subr.bf16.mxu0 0
        %854 = vmatpush1.bf16.msra.mxu0 %v753
        %855 = vmatprep.subr.bf16.mxu0 0
        %856 = vmatpush1.bf16.msra.mxu0 %v754
        %857 = vmatprep.subr.bf16.mxu0 0
        %858 = vmatpush1.bf16.msra.mxu0 %v755
        %859 = vmatprep.subr.bf16.mxu0 0
        %860 = vmatpush1.bf16.msra.mxu0 %v756
        %861 = vmatprep.subr.bf16.mxu0 0
        %862 = vmatpush1.bf16.msra.mxu0 %v757
        %863 = vmatprep.subr.bf16.mxu0 0
        %864 = vmatpush1.bf16.msra.mxu0 %v758
        %865 = vmatprep.subr.bf16.mxu0 0
        %866 = vmatpush1.bf16.msra.mxu0 %v759
        %867 = vmatprep.subr.bf16.mxu0 0
        %868 = vmatpush1.bf16.msra.mxu0 %v760
        %869 = vmatprep.subr.bf16.mxu0 0
        %870 = vmatpush1.bf16.msra.mxu0 %v761
        %871 = vmatprep.mubr.bf16.mxu0 %v464
        %872 = vmatmul.mubr.bf16.gmra.mrb[0].mxu0 %v463
        %v873 = vpop.f32.mrb[0].mxu0
        %v874 = vadd.f32 %v834, %v873
        %v875 = vpop.f32.mrb[0].mxu0
        %v876 = vpop.f32.mrb[0].mxu0
        %v877 = vpop.f32.mrb[0].mxu0
        %878 = vdwg.mxu0
        %879 = vmatprep.subr.bf16.mxu0 0
        %880 = vmatpush1.bf16.msra.mxu0 %v762
        %881 = vmatprep.subr.bf16.mxu0 0
        %882 = vmatpush1.bf16.msra.mxu0 0
        %883 = vmatprep.subr.bf16.mxu0 0
        %884 = vmatpush1.bf16.msra.mxu0 0
        %885 = vmatprep.subr.bf16.mxu0 0
        %886 = vmatpush1.bf16.msra.mxu0 0
        %887 = vmatprep.subr.bf16.mxu0 0
        %888 = vmatpush1.bf16.msra.mxu0 0
        %889 = vmatprep.subr.bf16.mxu0 0
        %890 = vmatpush1.bf16.msra.mxu0 0
        %891 = vmatprep.subr.bf16.mxu0 0
        %892 = vmatpush1.bf16.msra.mxu0 0
        %893 = vmatprep.subr.bf16.mxu0 0
        %894 = vmatpush1.bf16.msra.mxu0 0
        %895 = vmatprep.subr.bf16.mxu0 0
        %896 = vmatpush1.bf16.msra.mxu0 0
        %897 = vmatprep.subr.bf16.mxu0 0
        %898 = vmatpush1.bf16.msra.mxu0 0
        %899 = vmatprep.subr.bf16.mxu0 0
        %900 = vmatpush1.bf16.msra.mxu0 0
        %901 = vmatprep.subr.bf16.mxu0 0
        %902 = vmatpush1.bf16.msra.mxu0 0
        %903 = vmatprep.subr.bf16.mxu0 0
        %904 = vmatpush1.bf16.msra.mxu0 0
        %905 = vmatprep.subr.bf16.mxu0 0
        %906 = vmatpush1.bf16.msra.mxu0 0
        %907 = vmatprep.subr.bf16.mxu0 0
        %908 = vmatpush1.bf16.msra.mxu0 0
        %909 = vmatprep.subr.bf16.mxu0 0
        %910 = vmatpush1.bf16.msra.mxu0 0
        %911 = vmatprep.mubr.bf16.mxu0 0
        %912 = vmatmul.mubr.bf16.gmra.mrb[0].mxu0 %v797
        %v913 = vpop.f32.mrb[0].mxu0
        %v914 = vadd.f32 %v874, %v913
        %v915 = vpop.f32.mrb[0].mxu0
        %v916 = vpop.f32.mrb[0].mxu0
        %v917 = vpop.f32.mrb[0].mxu0
        %918 = vdwg.mxu0
        %v985 = vunpack.c.l.b16 %v466
        %v986 = vunpack.c.l.b16 %v467
        %v987 = vunpack.c.l.b16 %v468
        %v988 = vunpack.c.l.b16 %v469
        %v989 = vunpack.c.l.b16 %v470
        %v990 = vunpack.c.l.b16 %v471
        %v991 = vunpack.c.l.b16 %v472
        %v992 = vunpack.c.l.b16 %v473
        %v993 = vunpack.c.l.b16 %v474
        %v994 = vunpack.c.l.b16 %v475
        %v995 = vunpack.c.l.b16 %v476
        %v996 = vunpack.c.l.b16 %v477
        %v997 = vunpack.c.l.b16 %v478
        %v998 = vunpack.c.l.b16 %v479
        %v999 = vunpack.c.l.b16 %v480
        %v1000 = vunpack.c.l.b16 %v481
        %v1001 = vunpack.c.l.b16 %v482
        %v1002 = vunpack.c.l.b16 %v483
        %v1003 = vunpack.c.l.b16 %v484
        %v1004 = vunpack.c.l.b16 %v485
        %v1005 = vunpack.c.l.b16 %v486
        %v1006 = vunpack.c.l.b16 %v487
        %v1007 = vunpack.c.l.b16 %v488
        %v1008 = vunpack.c.l.b16 %v489
        %v1009 = vunpack.c.l.b16 %v490
        %v1010 = vunpack.c.l.b16 %v491
        %v1011 = vunpack.c.l.b16 %v492
        %v1012 = vunpack.c.l.b16 %v493
        %v1013 = vunpack.c.l.b16 %v494
        %v1014 = vunpack.c.l.b16 %v495
        %v1015 = vunpack.c.l.b16 %v496
        %v1016 = vunpack.c.l.b16 %v497
        %v1017 = vunpack.c.l.b16 %v498
        %v1018 = vunpack.c.l.b16 %v499
        %v1019 = vunpack.c.l.b16 %v500
        %v1020 = vunpack.c.l.b16 %v501
        %v1021 = vunpack.c.l.b16 %v502
        %v1022 = vunpack.c.l.b16 %v503
        %v1023 = vunpack.c.l.b16 %v504
        %v1024 = vunpack.c.l.b16 %v505
        %v1025 = vunpack.c.l.b16 %v506
        %v1026 = vunpack.c.l.b16 %v507
        %v1027 = vunpack.c.l.b16 %v508
        %v1028 = vunpack.c.l.b16 %v509
        %v1029 = vunpack.c.l.b16 %v510
        %v1030 = vunpack.c.l.b16 %v511
        %v1031 = vunpack.c.l.b16 %v512
        %v1032 = vunpack.c.l.b16 %v513
        %v1033 = vunpack.c.l.b16 %v514
        %v1034 = vunpack.c.l.b16 %v515
        %v1035 = vunpack.c.l.b16 %v516
        %v1036 = vunpack.c.l.b16 %v517
        %v1037 = vunpack.c.l.b16 %v518
        %v1038 = vunpack.c.l.b16 %v519
        %v1039 = vunpack.c.l.b16 %v520
        %v1040 = vunpack.c.l.b16 %v521
        %v1041 = vunpack.c.l.b16 %v522
        %v1042 = vunpack.c.l.b16 %v523
        %v1043 = vunpack.c.l.b16 %v524
        %v1044 = vunpack.c.l.b16 %v525
        %v1045 = vunpack.c.l.b16 %v526
        %v1046 = vunpack.c.l.b16 %v527
        %v1047 = vunpack.c.l.b16 %v528
        %v1048 = vunpack.c.l.b16 %v529
        %v1049 = vunpack.c.l.b16 %v530
        %v1050 = vunpack.c.l.b16 %v531
        %v1051 = vpack.c.b16 %v986, %v985
        %v1052 = vpack.c.b16 %v988, %v987
        %v1053 = vpack.c.b16 %v990, %v989
        %v1054 = vpack.c.b16 %v992, %v991
        %v1055 = vpack.c.b16 %v994, %v993
        %v1056 = vpack.c.b16 %v996, %v995
        %v1057 = vpack.c.b16 %v998, %v997
        %v1058 = vpack.c.b16 %v1000, %v999
        %v1059 = vpack.c.b16 %v1002, %v1001
        %v1060 = vpack.c.b16 %v1004, %v1003
        %v1061 = vpack.c.b16 %v1006, %v1005
        %v1062 = vpack.c.b16 %v1008, %v1007
        %v1063 = vpack.c.b16 %v1010, %v1009
        %v1064 = vpack.c.b16 %v1012, %v1011
        %v1065 = vpack.c.b16 %v1014, %v1013
        %v1066 = vpack.c.b16 %v1016, %v1015
        %v1067 = vpack.c.b16 %v1018, %v1017
        %v1068 = vpack.c.b16 %v1020, %v1019
        %v1069 = vpack.c.b16 %v1022, %v1021
        %v1070 = vpack.c.b16 %v1024, %v1023
        %v1071 = vpack.c.b16 %v1026, %v1025
        %v1072 = vpack.c.b16 %v1028, %v1027
        %v1073 = vpack.c.b16 %v1030, %v1029
        %v1074 = vpack.c.b16 %v1032, %v1031
        %v1075 = vpack.c.b16 %v1034, %v1033
        %v1076 = vpack.c.b16 %v1036, %v1035
        %v1077 = vpack.c.b16 %v1038, %v1037
        %v1078 = vpack.c.b16 %v1040, %v1039
        %v1079 = vpack.c.b16 %v1042, %v1041
        %v1080 = vpack.c.b16 %v1044, %v1043
        %v1081 = vpack.c.b16 %v1046, %v1045
        %v1082 = vpack.c.b16 %v1048, %v1047
        %v1083 = vpack.c.b16 %v1050, %v1049
        %1117 = vmatprep.subr.bf16.mxu0 0
        %1118 = vmatpush1.bf16.msra.mxu0 %v1051
        %1119 = vmatprep.subr.bf16.mxu0 0
        %1120 = vmatpush1.bf16.msra.mxu0 %v1052
        %1121 = vmatprep.subr.bf16.mxu0 0
        %1122 = vmatpush1.bf16.msra.mxu0 %v1053
        %1123 = vmatprep.subr.bf16.mxu0 0
        %1124 = vmatpush1.bf16.msra.mxu0 %v1054
        %1125 = vmatprep.subr.bf16.mxu0 0
        %1126 = vmatpush1.bf16.msra.mxu0 %v1055
        %1127 = vmatprep.subr.bf16.mxu0 0
        %1128 = vmatpush1.bf16.msra.mxu0 %v1056
        %1129 = vmatprep.subr.bf16.mxu0 0
        %1130 = vmatpush1.bf16.msra.mxu0 %v1057
        %1131 = vmatprep.subr.bf16.mxu0 0
        %1132 = vmatpush1.bf16.msra.mxu0 %v1058
        %1133 = vmatprep.subr.bf16.mxu0 0
        %1134 = vmatpush1.bf16.msra.mxu0 %v1059
        %1135 = vmatprep.subr.bf16.mxu0 0
        %1136 = vmatpush1.bf16.msra.mxu0 %v1060
        %1137 = vmatprep.subr.bf16.mxu0 0
        %1138 = vmatpush1.bf16.msra.mxu0 %v1061
        %1139 = vmatprep.subr.bf16.mxu0 0
        %1140 = vmatpush1.bf16.msra.mxu0 %v1062
        %1141 = vmatprep.subr.bf16.mxu0 0
        %1142 = vmatpush1.bf16.msra.mxu0 %v1063
        %1143 = vmatprep.subr.bf16.mxu0 0
        %1144 = vmatpush1.bf16.msra.mxu0 %v1064
        %1145 = vmatprep.subr.bf16.mxu0 0
        %1146 = vmatpush1.bf16.msra.mxu0 %v1065
        %1147 = vmatprep.subr.bf16.mxu0 0
        %1148 = vmatpush1.bf16.msra.mxu0 %v1066
        %1149 = vmatprep.mubr.bf16.mxu0 %v462
        %1150 = vmatmul.mubr.bf16.gmra.mrb[0].mxu0 %v461
        %v1151 = vpop.f32.mrb[0].mxu0
        %v1152 = vadd.f32 %v914, %v1151
        %v1153 = vpop.f32.mrb[0].mxu0
        %v1154 = vpop.f32.mrb[0].mxu0
        %v1155 = vpop.f32.mrb[0].mxu0
        %1156 = vdwg.mxu0
        %1157 = vmatprep.subr.bf16.mxu0 0
        %1158 = vmatpush1.bf16.msra.mxu0 %v1067
        %1159 = vmatprep.subr.bf16.mxu0 0
        %1160 = vmatpush1.bf16.msra.mxu0 %v1068
        %1161 = vmatprep.subr.bf16.mxu0 0
        %1162 = vmatpush1.bf16.msra.mxu0 %v1069
        %1163 = vmatprep.subr.bf16.mxu0 0
        %1164 = vmatpush1.bf16.msra.mxu0 %v1070
        %1165 = vmatprep.subr.bf16.mxu0 0
        %1166 = vmatpush1.bf16.msra.mxu0 %v1071
        %1167 = vmatprep.subr.bf16.mxu0 0
        %1168 = vmatpush1.bf16.msra.mxu0 %v1072
        %1169 = vmatprep.subr.bf16.mxu0 0
        %1170 = vmatpush1.bf16.msra.mxu0 %v1073
        %1171 = vmatprep.subr.bf16.mxu0 0
        %1172 = vmatpush1.bf16.msra.mxu0 %v1074
        %1173 = vmatprep.subr.bf16.mxu0 0
        %1174 = vmatpush1.bf16.msra.mxu0 %v1075
        %1175 = vmatprep.subr.bf16.mxu0 0
        %1176 = vmatpush1.bf16.msra.mxu0 %v1076
        %1177 = vmatprep.subr.bf16.mxu0 0
        %1178 = vmatpush1.bf16.msra.mxu0 %v1077
        %1179 = vmatprep.subr.bf16.mxu0 0
        %1180 = vmatpush1.bf16.msra.mxu0 %v1078
        %1181 = vmatprep.subr.bf16.mxu0 0
        %1182 = vmatpush1.bf16.msra.mxu0 %v1079
        %1183 = vmatprep.subr.bf16.mxu0 0
        %1184 = vmatpush1.bf16.msra.mxu0 %v1080
        %1185 = vmatprep.subr.bf16.mxu0 0
        %1186 = vmatpush1.bf16.msra.mxu0 %v1081
        %1187 = vmatprep.subr.bf16.mxu0 0
        %1188 = vmatpush1.bf16.msra.mxu0 %v1082
        %1189 = vmatprep.mubr.bf16.mxu0 %v464
        %1190 = vmatmul.mubr.bf16.gmra.mrb[0].mxu0 %v463
        %v1191 = vpop.f32.mrb[0].mxu0
        %v1192 = vadd.f32 %v1152, %v1191
        %v1193 = vpop.f32.mrb[0].mxu0
        %v1194 = vpop.f32.mrb[0].mxu0
        %v1195 = vpop.f32.mrb[0].mxu0
        %1196 = vdwg.mxu0
        %1197 = vmatprep.subr.bf16.mxu0 0
        %1198 = vmatpush1.bf16.msra.mxu0 %v1083
        %1199 = vmatprep.subr.bf16.mxu0 0
        %1200 = vmatpush1.bf16.msra.mxu0 0
        %1201 = vmatprep.subr.bf16.mxu0 0
        %1202 = vmatpush1.bf16.msra.mxu0 0
        %1203 = vmatprep.subr.bf16.mxu0 0
        %1204 = vmatpush1.bf16.msra.mxu0 0
        %1205 = vmatprep.subr.bf16.mxu0 0
        %1206 = vmatpush1.bf16.msra.mxu0 0
        %1207 = vmatprep.subr.bf16.mxu0 0
        %1208 = vmatpush1.bf16.msra.mxu0 0
        %1209 = vmatprep.subr.bf16.mxu0 0
        %1210 = vmatpush1.bf16.msra.mxu0 0
        %1211 = vmatprep.subr.bf16.mxu0 0
        %1212 = vmatpush1.bf16.msra.mxu0 0
        %1213 = vmatprep.subr.bf16.mxu0 0
        %1214 = vmatpush1.bf16.msra.mxu0 0
        %1215 = vmatprep.subr.bf16.mxu0 0
        %1216 = vmatpush1.bf16.msra.mxu0 0
        %1217 = vmatprep.subr.bf16.mxu0 0
        %1218 = vmatpush1.bf16.msra.mxu0 0
        %1219 = vmatprep.subr.bf16.mxu0 0
        %1220 = vmatpush1.bf16.msra.mxu0 0
        %1221 = vmatprep.subr.bf16.mxu0 0
        %1222 = vmatpush1.bf16.msra.mxu0 0
        %1223 = vmatprep.subr.bf16.mxu0 0
        %1224 = vmatpush1.bf16.msra.mxu0 0
        %1225 = vmatprep.subr.bf16.mxu0 0
        %1226 = vmatpush1.bf16.msra.mxu0 0
        %1227 = vmatprep.subr.bf16.mxu0 0
        %1228 = vmatpush1.bf16.msra.mxu0 0
        %1229 = vmatprep.mubr.bf16.mxu0 0
        %1230 = vmatmul.mubr.bf16.gmra.mrb[0].mxu0 %v797
        %v1231 = vpop.f32.mrb[0].mxu0
        %v1232 = vadd.f32 %v1192, %v1231
        %v1233 = vpop.f32.mrb[0].mxu0
        %v1234 = vpop.f32.mrb[0].mxu0
        %v1235 = vpop.f32.mrb[0].mxu0
        %1236 = vdwg.mxu0
        %v1237 = vld [vmem:[%s4] sm:$0x1]
        %v1239 = vlaneseq
        %v1240 = vshrl.u32 %v1239, 7
        %v1241 = vsub.s32 0, %v1240
        %v1242 = vrot.slane %v1237, %v1241
        %v1244 = vadd.f32 %v1232, %v1242
        %1245 = vst [vmem:[%s283] sm:$0xff] %v1244
        %s1246 = sand.u32 %s142, 1
        %s1247 = scalar_lea.sflag [#allocation4], %s1246
        %s1248 = sand.u32 %s142, 1
        %s1249 = smul.addr %s1248, 8
        %s1250 = scalar_lea.vmem [#allocation10], %s1249
        // Predicated region
        $region57: #{tpu_custom_call.1} parent=39 // pred_check
          %p1251 = pneg %p152
        $region58: #{tpu_custom_call.1} parent=39 // pred_check_branch
          %1253 = sbr.rel (%p1251) target = $region60
        $region59: #{tpu_custom_call.1} parent=39 // pred_region
          %s1255 = ssub.s32 128, 128
          %1256 = vsyncadd %s1247, %s1255
          %s1257 = smul.addr %s24, 128
          %s1258 = scalar_lea.hbm %s5, %s1257
          %s1260 = sshll.u32 %s1250, 4
          %s1261 = int_to_ptr.vmem [resolvable:$true] %s1260
          %1263 = dma.vmem_to_hbm [thread:$0]  %s1261, 128, %s1258, %s1247
        $region60: #{tpu_custom_call.1} parent=39 // pred_fallthru
          _
      $region40: #{tpu_custom_call.1} parent=5 // pred_fallthru
        _
      %p1264 = scmp.le.s32.totalorder 2, %s19
      // Predicated region
      $region61: #{tpu_custom_call.1} parent=5 // pred_check
        %p1265 = pneg %p1264
      $region62: #{tpu_custom_call.1} parent=5 // pred_check_branch
        %1267 = sbr.rel (%p1265) target = $region64
      $region63: #{tpu_custom_call.1} parent=5 // pred_region
        %s1268 = ssub.s32 %s19, 2
        // Predicated region
        $region65: #{tpu_custom_call.1} parent=63 // pred_check
          %p1269 = pneg %p158
        $region66: #{tpu_custom_call.1} parent=63 // pred_check_branch
          %1271 = sbr.rel (%p1269) target = $region68
        $region67: #{tpu_custom_call.1} parent=63 // pred_region
          %s1272 = sand.u32 %s143, 1
          %s1273 = scalar_lea.sflag [#allocation4], %s1272
          %s1274 = sand.u32 %s143, 1
          %s1275 = smul.addr %s1274, 8
          %s1276 = scalar_lea.vmem [#allocation10], %s1275
          %1277 = dma.done %s1273, 128
        $region68: #{tpu_custom_call.1} parent=63 // pred_fallthru
          _
      $region64: #{tpu_custom_call.1} parent=5 // pred_fallthru
        _
    $region6: #{tpu_custom_call.1} parent=1 // loop_footer
      %s23 = sadd.s32 1, %s19
    $region7: #{tpu_custom_call.1} parent=1 // loop_footer_branch
      %18 = sbr.rel target = $region3
    $region8: #{tpu_custom_call.1} parent=1 // loop_exit
      _
    %1278 = vsyncpa [#allocation3], 1
    %s1279 = scalar_lea.sflag [#allocation3], 1
    %1280 = vsyncpa %s1279, 1
    %1281 = vsyncpa [#allocation6], 1
    %1282 = vsyncpa [#allocation9], 1
    %1283 = vsyncpa [#allocation4], 1
    %s1284 = scalar_lea.sflag [#allocation4], 1
    %1285 = vsyncpa %s1284, 1

</llo_original>
